<compile_context>
chip_gen: v7x
topology: tpu7x:2x2x1
jax: 0.10.0
libtpu: 0.0.40
codegen_flags: <defaults>
</compile_context>

<pallas_src>
import functools

import jax
import jax.numpy as jnp
from jax import lax
from jax.experimental import pallas as pl
from jax.experimental.pallas import tpu as pltpu


def _ntxent_kernel(z_row_ref, z_prt_ref, z_col_ref, loss_ref,
                   zn_row_ref, pos_ref, denom_ref,
                   *, inv_temp, use_bf16_matmul):
    kc = pl.program_id(1)
    last_kc = pl.num_programs(1) - 1

    @pl.when(kc == 0)
    def _init():
        # Normalize the row block once and cache it for every column step.
        # rsqrt goes to the EUP slot; eps is squared because we clamp ||z||^2.
        zr = z_row_ref[...].astype(jnp.float32)
        zr_ss = jnp.sum(zr * zr, axis=-1, keepdims=True)
        zn_r = zr * lax.rsqrt(jnp.maximum(zr_ss, 1e-16))
        zn_row_ref[...] = zn_r

        # Positive pairs: the partner block holds rows (i + N) mod 2N, so the
        # positive similarity is a plain row-wise dot -- no (2N,2N) pos mask.
        zp = z_prt_ref[...].astype(jnp.float32)
        zp_ss = jnp.sum(zp * zp, axis=-1, keepdims=True)
        zn_p = zp * lax.rsqrt(jnp.maximum(zp_ss, 1e-16))
        pos_ref[...] = jnp.sum(zn_r * zn_p, axis=-1, keepdims=True)

        # ~eye mask replaced by a diagonal correction: start the denominator
        # accumulator at -exp(diag/T); the unmasked column sums add it back.
        self_sim = jnp.sum(zn_r * zn_r, axis=-1, keepdims=True)
        denom_ref[...] = -jnp.exp(self_sim * inv_temp)

    # ---- every (row-block, col-block) step: one MXU tile of sim ----
    zc = z_col_ref[...].astype(jnp.float32)
    zc_ss = jnp.sum(zc * zc, axis=-1, keepdims=True)
    zn_c = zc * lax.rsqrt(jnp.maximum(zc_ss, 1e-16))
    zn_r = zn_row_ref[...]

    if use_bf16_matmul:
        lhs = zn_r.astype(jnp.bfloat16)
        rhs = zn_c.astype(jnp.bfloat16)
    else:
        lhs, rhs = zn_r, zn_c

    # Contract over the last (lane) dim of both operands -> no transposed copy.
    sim = lax.dot_general(
        lhs, rhs,
        dimension_numbers=(((1,), (1,)), ((), ())),
        preferred_element_type=jnp.float32,
    )  # (TM, TN)

    denom_ref[...] += jnp.sum(jnp.exp(sim * inv_temp), axis=1, keepdims=True)

    @pl.when(kc == last_kc)
    def _finalize():
        # -log(exp(pos/T) / denom) = -pos/T + log(denom)
        loss_ref[...] = -pos_ref[...] * inv_temp + jnp.log(denom_ref[...])


def _pick_tile(extent, cap):
    """Largest multiple of 8 that divides `extent`, capped at `cap`."""
    t = min(cap, extent)
    t -= t % 8
    while t >= 8 and extent % t:
        t -= 8
    return t if t >= 8 else extent


def ntxent_loss(z_i, z_j, temperature=1.0, *, use_bf16_matmul=False,
                tm_max=512, tn_max=1024, vmem_limit_bytes=None):
    """NT-Xent loss. z_i, z_j: (N, D) arrays. Returns a scalar f32 loss.

    Tile budget note: the dominant VMEM term is the (TM, TN) f32 sim tile; the
    defaults (<= 512 x 1024 -> 2 MiB) are comfortable on v5e/v6e (128 MiB) and
    v7x (64 MiB). On v6e you may raise tn_max / vmem_limit_bytes for fewer,
    larger grid steps.
    """
    n, d = z_i.shape
    assert z_j.shape == (n, d)
    assert n % 8 == 0, "NT-Xent Pallas kernel requires batch size N % 8 == 0"

    n2 = 2 * n
    # Concatenate in the wrapper (no in-kernel sublane copy; row-tileable) and
    # zero-pad the feature dim to a lane-dense multiple of 128 (padding zeros
    # change neither norms nor dot products).
    z = jnp.concatenate([z_i, z_j], axis=0)
    dp = ((d + 127) // 128) * 128
    if dp != d:
        z = jnp.pad(z, ((0, 0), (0, dp - d)))

    tm = _pick_tile(n, tm_max)    # row-block size (divides N so partner blocks line up)
    tn = _pick_tile(n2, tn_max)   # column (reduction) block size
    nrb = n2 // tm
    ncb = n2 // tn
    half = n // tm                # partner block offset: rows (i + N) mod 2N

    kernel = functools.partial(
        _ntxent_kernel,
        inv_temp=float(1.0 / temperature),
        use_bf16_matmul=use_bf16_matmul,
    )

    grid_spec = pltpu.PrefetchScalarGridSpec(
        num_scalar_prefetch=0,
        grid=(nrb, ncb),
        in_specs=[
            pl.BlockSpec((tm, dp), lambda rb, kc: (rb, 0)),                 # row block
            pl.BlockSpec((tm, dp), lambda rb, kc: ((rb + half) % nrb, 0)),  # partner block
            pl.BlockSpec((tn, dp), lambda rb, kc: (kc, 0)),                 # column block
        ],
        out_specs=pl.BlockSpec((tm, 1), lambda rb, kc: (rb, 0)),            # per-row losses
        scratch_shapes=[
            pltpu.VMEM((tm, dp), jnp.float32),  # cached normalized row block
            pltpu.VMEM((tm, 1), jnp.float32),   # positives
            pltpu.VMEM((tm, 1), jnp.float32),   # denominator accumulator
        ],
    )

    per_row_losses = pl.pallas_call(
        kernel,
        out_shape=jax.ShapeDtypeStruct((n2, 1), jnp.float32),
        grid_spec=grid_spec,
        compiler_params=pltpu.CompilerParams(
            dimension_semantics=("parallel", "arbitrary"),
            vmem_limit_bytes=vmem_limit_bytes,
        ),
    )(z, z, z)

    return jnp.sum(per_row_losses) / jnp.float32(n2)


def _ntxent_ref(z_i, z_j, temperature=1.0):
    """Pure-JAX reference mirroring the PyTorch module (for validation)."""
    n = z_i.shape[0]
    z = jnp.concatenate([z_i, z_j], axis=0).astype(jnp.float32)
    zn = z / jnp.maximum(jnp.linalg.norm(z, axis=-1, keepdims=True), 1e-8)
    sim = zn @ zn.T
    sim_ij = jnp.diagonal(sim, offset=n)
    sim_ji = jnp.diagonal(sim, offset=-n)
    positives = jnp.concatenate([sim_ij, sim_ji], axis=0)
    mask = 1.0 - jnp.eye(2 * n, dtype=jnp.float32)
    numerator = jnp.exp(positives / temperature)
    denominator = jnp.sum(mask * jnp.exp(sim / temperature), axis=1)
    all_losses = -jnp.log(numerator / denominator)
    return jnp.sum(all_losses) / (2 * n)


if __name__ == "__main__":
    key = jax.random.PRNGKey(0)
    k1, k2 = jax.random.split(key)
    N, D = 8, 32  # small embedding batch: anchor/positive pairs of dim 32
    z_i = jax.random.normal(k1, (N, D), dtype=jnp.float32)
    z_j = jax.random.normal(k2, (N, D), dtype=jnp.float32)

    temperature = 0.5
    ref = _ntxent_ref(z_i, z_j, temperature=temperature)

    # Default path: f32 similarity matmul (bit-for-bit semantics of the module).
    loss = jax.block_until_ready(ntxent_loss(z_i, z_j, temperature=temperature))
    assert jnp.allclose(loss, ref, rtol=2e-5, atol=2e-5), (loss, ref)

    # Optional bf16 MXU path (f32 accumulation): ~2x MXU throughput, looser
    # tolerance vs. the f32 reference.
    loss_bf16 = jax.block_until_ready(
        ntxent_loss(z_i, z_j, temperature=temperature, use_bf16_matmul=True))
    assert jnp.allclose(loss_bf16, ref, rtol=1e-2, atol=1e-2), (loss_bf16, ref)

    print("KERNEL_OK")
</pallas_src>

<mosaic_0001>
module attributes {stable_mosaic.version = 11 : i64} {
  func.func @_ntxent_kernel(%arg0: i32, %arg1: i32, %arg2: memref<8x128xf32, #tpu.memory_space<vmem>>, %arg3: memref<8x128xf32, #tpu.memory_space<vmem>>, %arg4: memref<16x128xf32, #tpu.memory_space<vmem>>, %arg5: memref<8x1xf32, #tpu.memory_space<vmem>>, %arg6: memref<8x128xf32, #tpu.memory_space<vmem>>, %arg7: memref<8x1xf32, #tpu.memory_space<vmem>>, %arg8: memref<8x1xf32, #tpu.memory_space<vmem>>) attributes {dimension_semantics = [#tpu.dimension_semantics<parallel>, #tpu.dimension_semantics<arbitrary>], iteration_bounds = array<i64: 2, 1>, scalar_prefetch = 0 : i64, scratch_operands = 3 : i64, tpu.core_type = #tpu.core_type<tc>, window_params = [{transform_indices = @transform_0, window_bounds = array<i64: 8, 128>}, {transform_indices = @transform_1, window_bounds = array<i64: 8, 128>}, {transform_indices = @transform_2, window_bounds = array<i64: 16, 128>}, {transform_indices = @transform_3, window_bounds = array<i64: 8, 1>}]} {
    %c0_i32 = arith.constant 0 : i32
    %0 = arith.cmpi eq, %arg1, %c0_i32 : i32
    %1 = arith.extui %0 : i1 to i32
    %c0_i32_0 = arith.constant 0 : i32
    %2 = arith.cmpi ne, %1, %c0_i32_0 : i32
    scf.if %2 {
      %c0_14 = arith.constant 0 : index
      %c0_15 = arith.constant 0 : index
      %25 = vector.load %arg2[%c0_14, %c0_15] : memref<8x128xf32, #tpu.memory_space<vmem>>, vector<8x128xf32>
      %26 = arith.mulf %25, %25 : vector<8x128xf32>
      %cst_16 = arith.constant dense<0.000000e+00> : vector<8xf32>
      %27 = vector.multi_reduction <add>, %26, %cst_16 [1] : vector<8x128xf32> to vector<8xf32>
      %28 = vector.shape_cast %27 : vector<8xf32> to vector<8x1xf32>
      %cst_17 = arith.constant 1.000000e-16 : f32
      %29 = vector.broadcast %cst_17 : f32 to vector<8x1xf32>
      %30 = arith.maximumf %28, %29 : vector<8x1xf32>
      %31 = math.rsqrt %30 : vector<8x1xf32>
      %32 = vector.broadcast %31 : vector<8x1xf32> to vector<8x128xf32>
      %33 = arith.mulf %25, %32 : vector<8x128xf32>
      %c0_18 = arith.constant 0 : index
      %c0_19 = arith.constant 0 : index
      %34 = vector.load %arg6[%c0_18, %c0_19] : memref<8x128xf32, #tpu.memory_space<vmem>>, vector<8x128xf32>
      tpu.vector_store %arg6[%c0_18, %c0_19], %33 {strides = array<i32>} : memref<8x128xf32, #tpu.memory_space<vmem>>, vector<8x128xf32>,
      %c0_20 = arith.constant 0 : index
      %c0_21 = arith.constant 0 : index
      %35 = vector.load %arg3[%c0_20, %c0_21] : memref<8x128xf32, #tpu.memory_space<vmem>>, vector<8x128xf32>
      %36 = arith.mulf %35, %35 : vector<8x128xf32>
      %cst_22 = arith.constant dense<0.000000e+00> : vector<8xf32>
      %37 = vector.multi_reduction <add>, %36, %cst_22 [1] : vector<8x128xf32> to vector<8xf32>
      %38 = vector.shape_cast %37 : vector<8xf32> to vector<8x1xf32>
      %cst_23 = arith.constant 1.000000e-16 : f32
      %39 = vector.broadcast %cst_23 : f32 to vector<8x1xf32>
      %40 = arith.maximumf %38, %39 : vector<8x1xf32>
      %41 = math.rsqrt %40 : vector<8x1xf32>
      %42 = vector.broadcast %41 : vector<8x1xf32> to vector<8x128xf32>
      %43 = arith.mulf %35, %42 : vector<8x128xf32>
      %44 = arith.mulf %33, %43 : vector<8x128xf32>
      %cst_24 = arith.constant dense<0.000000e+00> : vector<8xf32>
      %45 = vector.multi_reduction <add>, %44, %cst_24 [1] : vector<8x128xf32> to vector<8xf32>
      %46 = vector.shape_cast %45 : vector<8xf32> to vector<8x1xf32>
      %c0_25 = arith.constant 0 : index
      %c0_26 = arith.constant 0 : index
      %47 = vector.load %arg7[%c0_25, %c0_26] : memref<8x1xf32, #tpu.memory_space<vmem>>, vector<8x1xf32>
      tpu.vector_store %arg7[%c0_25, %c0_26], %46 {strides = array<i32>} : memref<8x1xf32, #tpu.memory_space<vmem>>, vector<8x1xf32>,
      %48 = arith.mulf %33, %33 : vector<8x128xf32>
      %cst_27 = arith.constant dense<0.000000e+00> : vector<8xf32>
      %49 = vector.multi_reduction <add>, %48, %cst_27 [1] : vector<8x128xf32> to vector<8xf32>
      %50 = vector.shape_cast %49 : vector<8xf32> to vector<8x1xf32>
      %cst_28 = arith.constant 2.000000e+00 : f32
      %51 = vector.broadcast %cst_28 : f32 to vector<8x1xf32>
      %52 = arith.mulf %50, %51 : vector<8x1xf32>
      %53 = math.exp %52 : vector<8x1xf32>
      %cst_29 = arith.constant 0.000000e+00 : f32
      %54 = vector.broadcast %cst_29 : f32 to vector<8x1xf32>
      %55 = arith.subf %54, %53 : vector<8x1xf32>
      %c0_30 = arith.constant 0 : index
      %c0_31 = arith.constant 0 : index
      %56 = vector.load %arg8[%c0_30, %c0_31] : memref<8x1xf32, #tpu.memory_space<vmem>>, vector<8x1xf32>
      tpu.vector_store %arg8[%c0_30, %c0_31], %55 {strides = array<i32>} : memref<8x1xf32, #tpu.memory_space<vmem>>, vector<8x1xf32>,
    } else {
    }
    %c0 = arith.constant 0 : index
    %c0_1 = arith.constant 0 : index
    %3 = vector.load %arg4[%c0, %c0_1] : memref<16x128xf32, #tpu.memory_space<vmem>>, vector<16x128xf32>
    %4 = arith.mulf %3, %3 : vector<16x128xf32>
    %cst = arith.constant dense<0.000000e+00> : vector<16xf32>
    %5 = vector.multi_reduction <add>, %4, %cst [1] : vector<16x128xf32> to vector<16xf32>
    %6 = vector.shape_cast %5 : vector<16xf32> to vector<16x1xf32>
    %cst_2 = arith.constant 1.000000e-16 : f32
    %7 = vector.broadcast %cst_2 : f32 to vector<16x1xf32>
    %8 = arith.maximumf %6, %7 : vector<16x1xf32>
    %9 = math.rsqrt %8 : vector<16x1xf32>
    %10 = vector.broadcast %9 : vector<16x1xf32> to vector<16x128xf32>
    %11 = arith.mulf %3, %10 : vector<16x128xf32>
    %c0_3 = arith.constant 0 : index
    %c0_4 = arith.constant 0 : index
    %12 = vector.load %arg6[%c0_3, %c0_4] : memref<8x128xf32, #tpu.memory_space<vmem>>, vector<8x128xf32>
    %cst_5 = arith.constant dense<0.000000e+00> : vector<8x16xf32>
    %13 = tpu.matmul %12, %11, %cst_5 {dimension_numbers = #tpu.dot_dimension_numbers<[1], [1], [0], [0], [0, 0, 1, 0], [], []>} : vector<8x128xf32>, vector<16x128xf32>, vector<8x16xf32> -> vector<8x16xf32>
    %c0_6 = arith.constant 0 : index
    %c0_7 = arith.constant 0 : index
    %14 = vector.load %arg8[%c0_6, %c0_7] : memref<8x1xf32, #tpu.memory_space<vmem>>, vector<8x1xf32>
    %cst_8 = arith.constant 2.000000e+00 : f32
    %15 = vector.broadcast %cst_8 : f32 to vector<8x16xf32>
    %16 = arith.mulf %13, %15 : vector<8x16xf32>
    %17 = math.exp %16 : vector<8x16xf32>
    %cst_9 = arith.constant dense<0.000000e+00> : vector<8xf32>
    %18 = vector.multi_reduction <add>, %17, %cst_9 [1] : vector<8x16xf32> to vector<8xf32>
    %19 = vector.shape_cast %18 : vector<8xf32> to vector<8x1xf32>
    %20 = arith.addf %14, %19 : vector<8x1xf32>
    %c0_10 = arith.constant 0 : index
    %c0_11 = arith.constant 0 : index
    %21 = vector.load %arg8[%c0_10, %c0_11] : memref<8x1xf32, #tpu.memory_space<vmem>>, vector<8x1xf32>
    tpu.vector_store %arg8[%c0_10, %c0_11], %20 {strides = array<i32>} : memref<8x1xf32, #tpu.memory_space<vmem>>, vector<8x1xf32>,
    %c0_i32_12 = arith.constant 0 : i32
    %22 = arith.cmpi eq, %arg1, %c0_i32_12 : i32
    %23 = arith.extui %22 : i1 to i32
    %c0_i32_13 = arith.constant 0 : i32
    %24 = arith.cmpi ne, %23, %c0_i32_13 : i32
    scf.if %24 {
      %c0_14 = arith.constant 0 : index
      %c0_15 = arith.constant 0 : index
      %25 = vector.load %arg7[%c0_14, %c0_15] : memref<8x1xf32, #tpu.memory_space<vmem>>, vector<8x1xf32>
      %cst_16 = arith.constant 0.000000e+00 : f32
      %26 = vector.broadcast %cst_16 : f32 to vector<8x1xf32>
      %27 = arith.subf %26, %25 : vector<8x1xf32>
      %cst_17 = arith.constant 2.000000e+00 : f32
      %28 = vector.broadcast %cst_17 : f32 to vector<8x1xf32>
      %29 = arith.mulf %27, %28 : vector<8x1xf32>
      %c0_18 = arith.constant 0 : index
      %c0_19 = arith.constant 0 : index
      %30 = vector.load %arg8[%c0_18, %c0_19] : memref<8x1xf32, #tpu.memory_space<vmem>>, vector<8x1xf32>
      %31 = math.log %30 : vector<8x1xf32>
      %32 = arith.addf %29, %31 : vector<8x1xf32>
      %c0_20 = arith.constant 0 : index
      %c0_21 = arith.constant 0 : index
      %33 = vector.load %arg5[%c0_20, %c0_21] : memref<8x1xf32, #tpu.memory_space<vmem>>, vector<8x1xf32>
      tpu.vector_store %arg5[%c0_20, %c0_21], %32 {strides = array<i32>} : memref<8x1xf32, #tpu.memory_space<vmem>>, vector<8x1xf32>,
    } else {
    }
    return
  }
  func.func @transform_0(%arg0: i32, %arg1: i32) -> (i32, i32) {
    %c0_i32 = arith.constant 0 : i32
    %c0_i32_0 = arith.constant 0 : i32
    return %arg0, %c0_i32 : i32, i32
  }
  func.func @transform_1(%arg0: i32, %arg1: i32) -> (i32, i32) {
    %c1_i32 = arith.constant 1 : i32
    %0 = arith.addi %arg0, %c1_i32 : i32
    %c2_i32 = arith.constant 2 : i32
    %c0_i32 = arith.constant 0 : i32
    %1 = arith.cmpi eq, %c2_i32, %c0_i32 : i32
    %c1_i32_0 = arith.constant 1 : i32
    %2 = arith.select %1, %c1_i32_0, %c2_i32 : i32
    %3 = arith.remsi %0, %2 : i32
    %c0_i32_1 = arith.constant 0 : i32
    %4 = arith.cmpi ne, %3, %c0_i32_1 : i32
    %c0_i32_2 = arith.constant 0 : i32
    %5 = arith.cmpi slt, %3, %c0_i32_2 : i32
    %c0_i32_3 = arith.constant 0 : i32
    %6 = arith.cmpi slt, %2, %c0_i32_3 : i32
    %7 = arith.xori %5, %6 : i1
    %8 = arith.andi %7, %4 : i1
    %9 = arith.addi %3, %2 : i32
    %10 = arith.select %8, %9, %3 : i32
    %c0_i32_4 = arith.constant 0 : i32
    %c0_i32_5 = arith.constant 0 : i32
    return %10, %c0_i32_4 : i32, i32
  }
  func.func @transform_2(%arg0: i32, %arg1: i32) -> (i32, i32) {
    %c0_i32 = arith.constant 0 : i32
    %c0_i32_0 = arith.constant 0 : i32
    return %arg1, %c0_i32 : i32, i32
  }
  func.func @transform_3(%arg0: i32, %arg1: i32) -> (i32, i32) {
    %c0_i32 = arith.constant 0 : i32
    %c0_i32_0 = arith.constant 0 : i32
    return %arg0, %c0_i32 : i32, i32
  }
}

</mosaic_0001>

<llo_original>
// kernel: tpu_custom_call.1
$region0: #{tpu_custom_call.1}
  #allocation0 [shape = 'u32[]', space=smem, size = 0x4, offset = 0x4, fixed_abs, tag = 'smem constant byte address 0x4 - core index']
  #allocation1 [shape = 'u32[144,128]{1,0:T(1,128)}', space=vmem, size = 0x12000, scoped, tag = 'internal scratch']
  #allocation2 [shape = 'f32[8,128]{1,0:T(8,128)}', space=vmem, size = 0x1000, scoped, tag = 'scratch operand']
  #allocation3 [shape = 'f32[8,1]{1,0:T(8,128)}', space=vmem, size = 0x1000, scoped, tag = 'scratch operand']
  #allocation4 [shape = 'f32[8,1]{1,0:T(8,128)}', space=vmem, size = 0x1000, scoped, tag = 'scratch operand']
  %s0 = inlined_call_operand.hbm [shape: f32[16,128], index: 0, kind: input, shape index: {}]
  %s1 = inlined_call_operand.hbm [shape: f32[16,128], index: 1, kind: input, shape index: {}]
  %s2 = inlined_call_operand.hbm [shape: f32[16,128], index: 2, kind: input, shape index: {}]
  %s3 = inlined_call_operand.vmem [shape: f32[16,1], index: 3, kind: output, shape index: {}]
  %s4 = sld [smem:[#allocation0]]
  $region65: #{tpu_custom_call.1} parent=0
    _
  %s6 = ssub.s32 1, %s4
  %s7 = scalar_select 0, %s6, %s4
  $region1: #{tpu_custom_call.1} parent=0
    #allocation5 [shape = 'u8[8192]{0}', space=vmem, size = 0x2000, scoped, tag = 'input window, operand 0']
    #allocation6 [shape = 's32[2]{0}', space=sflag, size = 0x8, scoped, tag = 'scoped memory for tpu_custom_call.1']
    #allocation7 [shape = 'u8[8192]{0}', space=vmem, size = 0x2000, scoped, tag = 'input window, operand 1']
    #allocation8 [shape = 's32[2]{0}', space=sflag, size = 0x8, scoped, tag = 'scoped memory for tpu_custom_call.1']
    #allocation9 [shape = 'u8[8192]{0}', space=vmem, size = 0x2000, scoped, tag = 'input window, operand 2, single buffered']
    %8 = vsyncpa [#allocation6], 0
    %s9 = scalar_lea.sflag [#allocation6], 1
    %10 = vsyncpa %s9, 0
    %11 = vsyncpa [#allocation8], 0
    %s12 = scalar_lea.sflag [#allocation8], 1
    %13 = vsyncpa %s12, 0
    loop: start=0, step=1, limit=4
    $region2: #{tpu_custom_call.1} parent=1 // loop_pre_header
      _
    $region3: #{tpu_custom_call.1} parent=1 // loop_header
      %s15 = sphi 0, %s19
      %p16 = scmp.ge.s32.totalorder %s15, 4
      %s22 = sphi 0, %s34
      %s23 = sphi 0, %s30
      %s24 = sphi 0, %s22
      %s25 = sphi 0, %s23
      %s26 = sphi 0, %s24
      %s27 = sphi 0, %s25
      %s37 = sphi 0, %s39
      %s40 = sphi 0, %s37
      %s41 = sphi 0, %s40
      %s57 = sphi 0, %s41
      %s89 = sphi 0, %s91
      %s92 = sphi 0, %s89
      %s93 = sphi 0, %s92
      %s109 = sphi 0, %s93
      %s115 = sphi 0, %s117
      %s118 = sphi 0, %s115
      %s119 = sphi 0, %s118
      %s135 = sphi 0, %s119
      %s141 = sphi 0, %s143
      %s144 = sphi 0, %s141
      %s145 = sphi 0, %s144
      %s161 = sphi 0, %s145
    $region4: #{tpu_custom_call.1} parent=1 // loop_header_branch
      %18 = sbr.rel (%p16) target = $region8
    $region5: #{tpu_custom_call.1} parent=1 // loop_body
      %s20 = ssub.s32 %s15, 1
      %s21 = ssub.s32 %s15, 2
      %s28 = sadd.s32 1, %s23
      %p29 = scmp.ge.s32.totalorder %s28, 1
      %s30 = scalar_select %p29, 0, %s28
      %s31 = sadd.s32 1, %s22
      %s32 = scalar_select %p29, %s31, %s22
      %p33 = scmp.ge.s32.totalorder %s32, 2
      %s34 = scalar_select %p33, 0, %s32
      %s35 = ssub.s32 %s22, %s34
      %p36 = scmp.eq.s32.totalorder %s35, 0
      %s38 = sadd.s32 %s37, 1
      %s39 = scalar_select %p36, %s37, %s38
      %p42 = pneg %p36
      %p43 = scmp.eq.s32.totalorder %s15, 1
      %p44 = por %p42, %p43
      %p45 = scmp.ne.s32.totalorder %s37, %s40
      %p46 = scmp.eq.s32.totalorder %s15, 0
      %p47 = por %p45, %p46
      %p48 = scmp.ne.s32.totalorder %s37, %s40
      %p49 = scmp.eq.s32.totalorder %s20, 1
      %p50 = por %p48, %p49
      %p51 = scmp.ne.s32.totalorder %s40, %s41
      %p52 = scmp.eq.s32.totalorder %s20, 0
      %p53 = por %p51, %p52
      %p54 = scmp.ne.s32.totalorder %s40, %s41
      %p55 = scmp.eq.s32.totalorder %s21, 1
      %p56 = por %p54, %p55
      %p58 = scmp.ne.s32.totalorder %s41, %s57
      %p59 = scmp.eq.s32.totalorder %s21, 0
      %p60 = por %p58, %p59
      %s61 = sadd.s32 %s22, 1
      %p62 = scmp.lt.s32.totalorder %s61, 0
      %s63 = ssub.s32 0, %s61
      %s64 = scalar_select %p62, %s63, %s61
      %s65 = sand.u32 %s64, 1
      %s66 = ssub.s32 0, %s65
      %s67 = scalar_select %p62, %s66, %s65
      %p68 = scmp.ne.s32.totalorder %s67, 0
      %p69 = scmp.lt.s32.totalorder %s67, 0
      %p70 = pnand %p69, %p68
      %p71 = pneg %p70
      %s72 = sadd.s32 %s67, 2
      %s73 = scalar_select %p71, %s72, %s67
      %s74 = sadd.s32 %s34, 1
      %p75 = scmp.lt.s32.totalorder %s74, 0
      %s76 = ssub.s32 0, %s74
      %s77 = scalar_select %p75, %s76, %s74
      %s78 = sand.u32 %s77, 1
      %s79 = ssub.s32 0, %s78
      %s80 = scalar_select %p75, %s79, %s78
      %p81 = scmp.ne.s32.totalorder %s80, 0
      %p82 = scmp.lt.s32.totalorder %s80, 0
      %p83 = pnand %p82, %p81
      %p84 = pneg %p83
      %s85 = sadd.s32 %s80, 2
      %s86 = scalar_select %p84, %s85, %s80
      %s87 = ssub.s32 %s73, %s86
      %p88 = scmp.eq.s32.totalorder %s87, 0
      %s90 = sadd.s32 %s89, 1
      %s91 = scalar_select %p88, %s89, %s90
      %p94 = pneg %p88
      %p95 = scmp.eq.s32.totalorder %s15, 1
      %p96 = por %p94, %p95
      %p97 = scmp.ne.s32.totalorder %s89, %s92
      %p98 = scmp.eq.s32.totalorder %s15, 0
      %p99 = por %p97, %p98
      %p100 = scmp.ne.s32.totalorder %s89, %s92
      %p101 = scmp.eq.s32.totalorder %s20, 1
      %p102 = por %p100, %p101
      %p103 = scmp.ne.s32.totalorder %s92, %s93
      %p104 = scmp.eq.s32.totalorder %s20, 0
      %p105 = por %p103, %p104
      %p106 = scmp.ne.s32.totalorder %s92, %s93
      %p107 = scmp.eq.s32.totalorder %s21, 1
      %p108 = por %p106, %p107
      %p110 = scmp.ne.s32.totalorder %s93, %s109
      %p111 = scmp.eq.s32.totalorder %s21, 0
      %p112 = por %p110, %p111
      %s113 = ssub.s32 %s23, %s30
      %p114 = scmp.eq.s32.totalorder %s113, 0
      %s116 = sadd.s32 %s115, 1
      %s117 = scalar_select %p114, %s115, %s116
      %p120 = pneg %p114
      %p121 = scmp.eq.s32.totalorder %s15, 1
      %p122 = por %p120, %p121
      %p123 = scmp.ne.s32.totalorder %s115, %s118
      %p124 = scmp.eq.s32.totalorder %s15, 0
      %p125 = por %p123, %p124
      %p126 = scmp.ne.s32.totalorder %s115, %s118
      %p127 = scmp.eq.s32.totalorder %s20, 1
      %p128 = por %p126, %p127
      %p129 = scmp.ne.s32.totalorder %s118, %s119
      %p130 = scmp.eq.s32.totalorder %s20, 0
      %p131 = por %p129, %p130
      %p132 = scmp.ne.s32.totalorder %s118, %s119
      %p133 = scmp.eq.s32.totalorder %s21, 1
      %p134 = por %p132, %p133
      %p136 = scmp.ne.s32.totalorder %s119, %s135
      %p137 = scmp.eq.s32.totalorder %s21, 0
      %p138 = por %p136, %p137
      %s139 = ssub.s32 %s22, %s34
      %p140 = scmp.eq.s32.totalorder %s139, 0
      %s142 = sadd.s32 %s141, 1
      %s143 = scalar_select %p140, %s141, %s142
      %p146 = pneg %p140
      %p147 = scmp.eq.s32.totalorder %s15, 1
      %p148 = por %p146, %p147
      %p149 = scmp.ne.s32.totalorder %s141, %s144
      %p150 = scmp.eq.s32.totalorder %s15, 0
      %p151 = por %p149, %p150
      %p152 = scmp.ne.s32.totalorder %s141, %s144
      %p153 = scmp.eq.s32.totalorder %s20, 1
      %p154 = por %p152, %p153
      %p155 = scmp.ne.s32.totalorder %s144, %s145
      %p156 = scmp.eq.s32.totalorder %s20, 0
      %p157 = por %p155, %p156
      %p158 = scmp.ne.s32.totalorder %s144, %s145
      %p159 = scmp.eq.s32.totalorder %s21, 1
      %p160 = por %p158, %p159
      %p162 = scmp.ne.s32.totalorder %s145, %s161
      %p163 = scmp.eq.s32.totalorder %s21, 0
      %p164 = por %p162, %p163
      %p165 = scmp.le.s32.totalorder 1, %s15
      %p166 = scmp.lt.s32.totalorder %s15, 3
      %p167 = pnand %p165, %p166
      %p168 = pneg %p167
      // Predicated region
      $region9: #{tpu_custom_call.1} parent=5 // pred_check
        _
      $region10: #{tpu_custom_call.1} parent=5 // pred_check_branch
        %170 = sbr.rel (%p167) target = $region12
      $region11: #{tpu_custom_call.1} parent=5 // pred_region
        %s171 = ssub.s32 %s15, 1
        // Predicated region
        $region13: #{tpu_custom_call.1} parent=11 // pred_check
          %p172 = pneg %p131
        $region14: #{tpu_custom_call.1} parent=11 // pred_check_branch
          %174 = sbr.rel (%p172) target = $region16
        $region15: #{tpu_custom_call.1} parent=11 // pred_region
          %s175 = smul.u32 2, %s25
          %s177 = ssub.s32 256, 256
          %178 = vsyncadd [#allocation8], %s177
          %s179 = smul.addr %s175, 128
          %s180 = scalar_lea.hbm %s2, %s179
          %s181 = sshll.u32 [#allocation9], 4
          %s182 = int_to_ptr.vmem [resolvable:$true] %s181
          %187 = dma.hbm_to_vmem [thread:$0]  %s180, 256, %s182, [#allocation8], 128, 128, 8
        $region16: #{tpu_custom_call.1} parent=11 // pred_fallthru
          _
      $region12: #{tpu_custom_call.1} parent=5 // pred_fallthru
        _
      %p188 = scmp.lt.s32.totalorder %s15, 2
      // Predicated region
      $region17: #{tpu_custom_call.1} parent=5 // pred_check
        %p189 = pneg %p188
      $region18: #{tpu_custom_call.1} parent=5 // pred_check_branch
        %191 = sbr.rel (%p189) target = $region20
      $region19: #{tpu_custom_call.1} parent=5 // pred_region
        // Predicated region
        $region21: #{tpu_custom_call.1} parent=19 // pred_check
          %p192 = pneg %p47
        $region22: #{tpu_custom_call.1} parent=19 // pred_check_branch
          %194 = sbr.rel (%p192) target = $region24
        $region23: #{tpu_custom_call.1} parent=19 // pred_region
          %s195 = sand.u32 %s37, 1
          %s196 = scalar_lea.sflag [#allocation6], %s195
          %s197 = sand.u32 %s37, 1
          %s198 = smul.addr %s197, 8
          %s199 = scalar_lea.vmem [#allocation5], %s198
          %s201 = ssub.s32 128, 128
          %202 = vsyncadd %s196, %s201
          %s203 = smul.addr %s22, 128
          %s204 = scalar_lea.hbm %s0, %s203
          %s206 = sshll.u32 %s199, 4
          %s207 = int_to_ptr.vmem [resolvable:$true] %s206
          %209 = dma.hbm_to_vmem [thread:$0]  %s204, 128, %s207, %s196
        $region24: #{tpu_custom_call.1} parent=19 // pred_fallthru
          _
        // Predicated region
        $region25: #{tpu_custom_call.1} parent=19 // pred_check
          %p210 = pneg %p99
        $region26: #{tpu_custom_call.1} parent=19 // pred_check_branch
          %212 = sbr.rel (%p210) target = $region28
        $region27: #{tpu_custom_call.1} parent=19 // pred_region
          %s213 = sand.u32 %s15, 1
          %s214 = scalar_lea.sflag [#allocation8], %s213
          %s215 = sand.u32 %s89, 1
          %s216 = smul.addr %s215, 8
          %s217 = scalar_lea.vmem [#allocation7], %s216
          %s218 = sadd.s32 %s22, 1
          %p219 = scmp.lt.s32.totalorder %s218, 0
          %s220 = ssub.s32 0, %s218
          %s221 = scalar_select %p219, %s220, %s218
          %s222 = sand.u32 %s221, 1
          %s223 = ssub.s32 0, %s222
          %s224 = scalar_select %p219, %s223, %s222
          %p225 = scmp.ne.s32.totalorder %s224, 0
          %p226 = scmp.lt.s32.totalorder %s224, 0
          %p227 = pnand %p226, %p225
          %p228 = pneg %p227
          %s229 = sadd.s32 %s224, 2
          %s230 = scalar_select %p228, %s229, %s224
          %s232 = ssub.s32 128, 128
          %233 = vsyncadd %s214, %s232
          %s234 = smul.addr %s230, 128
          %s235 = scalar_lea.hbm %s1, %s234
          %s237 = sshll.u32 %s217, 4
          %s238 = int_to_ptr.vmem [resolvable:$true] %s237
          %240 = dma.hbm_to_vmem [thread:$0]  %s235, 128, %s238, %s214
        $region28: #{tpu_custom_call.1} parent=19 // pred_fallthru
          _
      $region20: #{tpu_custom_call.1} parent=5 // pred_fallthru
        _
      %p241 = scmp.le.s32.totalorder 1, %s15
      %p242 = scmp.lt.s32.totalorder %s15, 3
      %p243 = pnand %p241, %p242
      %p244 = pneg %p243
      // Predicated region
      $region29: #{tpu_custom_call.1} parent=5 // pred_check
        _
      $region30: #{tpu_custom_call.1} parent=5 // pred_check_branch
        %246 = sbr.rel (%p243) target = $region32
      $region31: #{tpu_custom_call.1} parent=5 // pred_region
        %s247 = ssub.s32 %s15, 1
        %s248 = sand.u32 %s40, 1
        %s249 = scalar_lea.sflag [#allocation6], %s248
        %s250 = sand.u32 %s40, 1
        %s251 = smul.addr %s250, 8
        %s252 = scalar_lea.vmem [#allocation5], %s251
        // Predicated region
        $region33: #{tpu_custom_call.1} parent=31 // pred_check
          %p253 = pneg %p53
        $region34: #{tpu_custom_call.1} parent=31 // pred_check_branch
          %255 = sbr.rel (%p253) target = $region36
        $region35: #{tpu_custom_call.1} parent=31 // pred_region
          %256 = dma.done %s249, 128
        $region36: #{tpu_custom_call.1} parent=31 // pred_fallthru
          _
        %s257 = sand.u32 %s20, 1
        %s258 = scalar_lea.sflag [#allocation8], %s257
        %s259 = sand.u32 %s92, 1
        %s260 = smul.addr %s259, 8
        %s261 = scalar_lea.vmem [#allocation7], %s260
        // Predicated region
        $region37: #{tpu_custom_call.1} parent=31 // pred_check
          %p262 = pneg %p105
        $region38: #{tpu_custom_call.1} parent=31 // pred_check_branch
          %264 = sbr.rel (%p262) target = $region40
        $region39: #{tpu_custom_call.1} parent=31 // pred_region
          %265 = dma.done %s258, 128
        $region40: #{tpu_custom_call.1} parent=31 // pred_fallthru
          _
        // Predicated region
        $region41: #{tpu_custom_call.1} parent=31 // pred_check
          %p266 = pneg %p131
        $region42: #{tpu_custom_call.1} parent=31 // pred_check_branch
          %268 = sbr.rel (%p266) target = $region44
        $region43: #{tpu_custom_call.1} parent=31 // pred_region
          %269 = dma.done [#allocation8], 256
        $region44: #{tpu_custom_call.1} parent=31 // pred_fallthru
          _
        %s270 = sand.u32 %s40, 1
        %s271 = scalar_lea.sflag [#allocation6], %s270
        %s272 = sand.u32 %s40, 1
        %s273 = smul.addr %s272, 8
        %s274 = scalar_lea.vmem [#allocation5], %s273
        %p275 = pneg %p53
        %p276 = pneg %p50
        %s277 = sand.u32 %s20, 1
        %s278 = scalar_lea.sflag [#allocation8], %s277
        %s279 = sand.u32 %s92, 1
        %s280 = smul.addr %s279, 8
        %s281 = scalar_lea.vmem [#allocation7], %s280
        %p282 = pneg %p105
        %p283 = pneg %p102
        %p284 = pneg %p131
        %p285 = pneg %p128
        %p286 = pneg %p157
        %p287 = pneg %p154
        %p288 = scmp.lt.s32.totalorder %s24, 1
        %s289 = scalar_select %p288, %s24, 1
        %s290 = smul.addr %s289, 8
        %s291 = scalar_lea.vmem %s3, %s290
        %s292 = sadd.s32 %s24, 1
        %p293 = scmp.lt.s32.totalorder %s292, 0
        %s294 = ssub.s32 0, %s292
        %s295 = scalar_select %p293, %s294, %s292
        %s296 = sand.u32 %s295, 1
        %s297 = ssub.s32 0, %s296
        %s298 = scalar_select %p293, %s297, %s296
        %p299 = scmp.ne.s32.totalorder %s298, 0
        %p300 = scmp.lt.s32.totalorder %s298, 0
        %p301 = pnand %p300, %p299
        %p302 = pneg %p301
        %s303 = sadd.s32 %s298, 2
        %s304 = scalar_select %p302, %s303, %s298
        %s305 = smul.u32 2, %s25
        %p306 = scmp.lt.s32.totalorder %s24, 1
        %s307 = scalar_select %p306, %s24, 1
        %s308 = smul.addr %s307, 8
        %s309 = scalar_lea.vmem %s3, %s308
        %p310 = scmp.eq.s32.totalorder %s25, 0
        // Predicated region
        $region45: #{tpu_custom_call.1} parent=31 // pred_check
          %p311 = pneg %p310
        $region46: #{tpu_custom_call.1} parent=31 // pred_check_branch
          %313 = sbr.rel (%p311) target = $region48
        $region47: #{tpu_custom_call.1} parent=31 // pred_region
          %v314 = vld [vmem:[%s252] sm:$0xff]
          %v315 = vmul.f32 %v314, %v314
          %316 = vadd.xlane.f32.xlu0 %v315
          %v317 = vpop.xlane.xlu0 %316
          %v318 = vmax.f32 %v317, 1e-16
          %v319 = vrsqrt.pop %v318
          %v320 = vmul.f32 %v314, %v319
          %321 = vst [vmem:[#allocation2] sm:$0xff] %v320
          %v322 = vld [vmem:[%s261] sm:$0xff]
          %v323 = vmul.f32 %v322, %v322
          %324 = vadd.xlane.f32.xlu0 %v323
          %v325 = vpop.xlane.xlu0 %324
          %v326 = vmax.f32 %v325, 1e-16
          %v327 = vrsqrt.pop %v326
          %v328 = vmul.f32 %v322, %v327
          %v329 = vmul.f32 %v320, %v328
          %330 = vadd.xlane.f32.xlu0 %v329
          %v331 = vpop.xlane.xlu0 %330
          %vm332 = vcmask 7168
          %333 = vst.msk [vmem:[#allocation3] sm:$0xff] %vm332, %v331
          %v334 = vmul.f32 %v320, %v320
          %335 = vadd.xlane.f32.xlu0 %v334
          %v336 = vpop.xlane.xlu0 %335
          %v337 = vmul.f32 %v336, 2.0
          %v338 = vmul.f32 %v337, 1.442695
          %v339 = vpow.pop %v338
          %v340 = vsub.f32 0.0, %v339
          %341 = vst.msk [vmem:[#allocation4] sm:$0xff] %vm332, %v340
        $region48: #{tpu_custom_call.1} parent=31 // pred_fallthru
          _
        %v342 = vld [vmem:[#allocation9] sm:$0xff]
        %v343 = vld [vmem:[#allocation9 + $0x8] sm:$0xff]
        %v344 = vmul.f32 %v342, %v342
        %v345 = vmul.f32 %v343, %v343
        %346 = vadd.xlane.f32.xlu0 %v344
        %v347 = vpop.xlane.xlu0 %346
        %348 = vadd.xlane.f32.xlu0 %v345
        %v349 = vpop.xlane.xlu0 %348
        %v350 = vmax.f32 %v347, 1e-16
        %v351 = vmax.f32 %v349, 1e-16
        %v352 = vrsqrt.pop %v350
        %v353 = vrsqrt.pop %v351
        %v354 = vmul.f32 %v342, %v352
        %v355 = vmul.f32 %v343, %v353
        %v356 = vld [vmem:[#allocation2] sm:$0xff]
        %357 = vmatprep.subr.mxu0 0.0
        %358 = vmatpush1.xpose.msra.mxu0 %v354
        %359 = vmatprep.subr.mxu0 0.0
        %360 = vmatpush1.xpose.msra.mxu0 %v355
        %361 = vmatprep.subr.mxu0 0.0
        %362 = vmatpush1.xpose.msra.mxu0 0.0
        %363 = vmatprep.subr.mxu0 0.0
        %364 = vmatpush1.xpose.msra.mxu0 0.0
        %365 = vmatprep.subr.mxu0 0.0
        %366 = vmatpush1.xpose.msra.mxu0 0.0
        %367 = vmatprep.subr.mxu0 0.0
        %368 = vmatpush1.xpose.msra.mxu0 0.0
        %369 = vmatprep.subr.mxu0 0.0
        %370 = vmatpush1.xpose.msra.mxu0 0.0
        %371 = vmatprep.subr.mxu0 0.0
        %372 = vmatpush1.xpose.msra.mxu0 0.0
        %373 = vmatprep.subr.mxu0 0.0
        %374 = vmatpush1.xpose.msra.mxu0 0.0
        %375 = vmatprep.subr.mxu0 0.0
        %376 = vmatpush1.xpose.msra.mxu0 0.0
        %377 = vmatprep.subr.mxu0 0.0
        %378 = vmatpush1.xpose.msra.mxu0 0.0
        %379 = vmatprep.subr.mxu0 0.0
        %380 = vmatpush1.xpose.msra.mxu0 0.0
        %381 = vmatprep.subr.mxu0 0.0
        %382 = vmatpush1.xpose.msra.mxu0 0.0
        %383 = vmatprep.subr.mxu0 0.0
        %384 = vmatpush1.xpose.msra.mxu0 0.0
        %385 = vmatprep.subr.mxu0 0.0
        %386 = vmatpush1.xpose.msra.mxu0 0.0
        %387 = vmatprep.subr.mxu0 0.0
        %388 = vmatpush1.xpose.msra.mxu0 0.0
        %389 = vmatprep.subr.mxu0 0.0
        %390 = vmatpush1.xpose.msra.mxu0 0.0
        %391 = vmatprep.subr.mxu0 0.0
        %392 = vmatpush1.xpose.msra.mxu0 0.0
        %393 = vmatprep.subr.mxu0 0.0
        %394 = vmatpush1.xpose.msra.mxu0 0.0
        %395 = vmatprep.subr.mxu0 0.0
        %396 = vmatpush1.xpose.msra.mxu0 0.0
        %397 = vmatprep.subr.mxu0 0.0
        %398 = vmatpush1.xpose.msra.mxu0 0.0
        %399 = vmatprep.subr.mxu0 0.0
        %400 = vmatpush1.xpose.msra.mxu0 0.0
        %401 = vmatprep.subr.mxu0 0.0
        %402 = vmatpush1.xpose.msra.mxu0 0.0
        %403 = vmatprep.subr.mxu0 0.0
        %404 = vmatpush1.xpose.msra.mxu0 0.0
        %405 = vmatprep.subr.mxu0 0.0
        %406 = vmatpush1.xpose.msra.mxu0 0.0
        %407 = vmatprep.subr.mxu0 0.0
        %408 = vmatpush1.xpose.msra.mxu0 0.0
        %409 = vmatprep.subr.mxu0 0.0
        %410 = vmatpush1.xpose.msra.mxu0 0.0
        %411 = vmatprep.subr.mxu0 0.0
        %412 = vmatpush1.xpose.msra.mxu0 0.0
        %413 = vmatprep.subr.mxu0 0.0
        %414 = vmatpush1.xpose.msra.mxu0 0.0
        %415 = vmatprep.subr.mxu0 0.0
        %416 = vmatpush1.xpose.msra.mxu0 0.0
        %417 = vmatprep.subr.mxu0 0.0
        %418 = vmatpush1.xpose.msra.mxu0 0.0
        %419 = vmatprep.subr.mxu0 0.0
        %420 = vmatpush1.xpose.msra.mxu0 0.0
        %421 = vmatprep.mubr.f32.mxu0 0.0
        %422 = vmatmul.mubr.f32.gmra.mrb[0].mxu0 %v356
        %v423 = vpop.f32.mrb[0].mxu0
        %v424 = vadd.f32 0.0, %v423
        %v425 = vpop.f32.mrb[0].mxu0
        %426 = vdwg.mxu0
        %v427 = vld [vmem:[#allocation4] sm:$0xff]
        %v428 = vmul.f32 %v424, 2.0
        %v429 = vmul.f32 %v428, 1.442695
        %v430 = vpow.pop %v429
        %vm431 = vcmask 130048
        %v432 = vsel %vm431, %v430, 0.0
        %433 = vadd.xlane.f32.xlu0 %v432
        %v434 = vpop.xlane.xlu0 %433
        %v435 = vadd.f32 %v427, %v434
        %vm436 = vcmask 7168
        %437 = vst.msk [vmem:[#allocation4] sm:$0xff] %vm436, %v435
        // Predicated region
        $region49: #{tpu_custom_call.1} parent=31 // pred_check
          %p438 = pneg %p310
        $region50: #{tpu_custom_call.1} parent=31 // pred_check_branch
          %440 = sbr.rel (%p438) target = $region52
        $region51: #{tpu_custom_call.1} parent=31 // pred_region
          %v441 = vld [vmem:[#allocation3] sm:$0xff]
          %v442 = vsub.f32 0.0, %v441
          %v443 = vmul.f32 %v442, 2.0
          %v444 = vld [vmem:[#allocation4] sm:$0xff]
          %v445 = vlog2.pop %v444
          %v446 = vmul.f32 %v445, 0.6931472
          %v447 = vadd.f32 %v443, %v446
          %448 = vst.msk [vmem:[%s309] sm:$0xff] %vm436, %v447
        $region52: #{tpu_custom_call.1} parent=31 // pred_fallthru
          _
        %p449 = scmp.lt.s32.totalorder %s24, 1
        %s450 = scalar_select %p449, %s24, 1
        %s451 = smul.addr %s450, 8
        %s452 = scalar_lea.vmem %s3, %s451
        // Predicated region
        $region53: #{tpu_custom_call.1} parent=31 // pred_check
          %p453 = pneg %p154
        $region54: #{tpu_custom_call.1} parent=31 // pred_check_branch
          %455 = sbr.rel (%p453) target = $region56
        $region55: #{tpu_custom_call.1} parent=31 // pred_region
          _
        $region56: #{tpu_custom_call.1} parent=31 // pred_fallthru
          _
      $region32: #{tpu_custom_call.1} parent=5 // pred_fallthru
        _
      %p456 = scmp.le.s32.totalorder 2, %s15
      // Predicated region
      $region57: #{tpu_custom_call.1} parent=5 // pred_check
        %p457 = pneg %p456
      $region58: #{tpu_custom_call.1} parent=5 // pred_check_branch
        %459 = sbr.rel (%p457) target = $region60
      $region59: #{tpu_custom_call.1} parent=5 // pred_region
        %s460 = ssub.s32 %s15, 2
        // Predicated region
        $region61: #{tpu_custom_call.1} parent=59 // pred_check
          %p461 = pneg %p160
        $region62: #{tpu_custom_call.1} parent=59 // pred_check_branch
          %463 = sbr.rel (%p461) target = $region64
        $region63: #{tpu_custom_call.1} parent=59 // pred_region
          %p464 = scmp.lt.s32.totalorder %s26, 1
          %s465 = scalar_select %p464, %s26, 1
          %s466 = smul.addr %s465, 8
          %s467 = scalar_lea.vmem %s3, %s466
        $region64: #{tpu_custom_call.1} parent=59 // pred_fallthru
          _
      $region60: #{tpu_custom_call.1} parent=5 // pred_fallthru
        _
    $region6: #{tpu_custom_call.1} parent=1 // loop_footer
      %s19 = sadd.s32 1, %s15
    $region7: #{tpu_custom_call.1} parent=1 // loop_footer_branch
      %14 = sbr.rel target = $region3
    $region8: #{tpu_custom_call.1} parent=1 // loop_exit
      _
    %468 = vsyncpa [#allocation6], 1
    %s469 = scalar_lea.sflag [#allocation6], 1
    %470 = vsyncpa %s469, 1
    %471 = vsyncpa [#allocation8], 1
    %s472 = scalar_lea.sflag [#allocation8], 1
    %473 = vsyncpa %s472, 1

</llo_original>
